<compile_context>
chip_gen: v7x
topology: tpu7x:2x2x1
jax: 0.10.0
libtpu: 0.0.40
codegen_flags: <defaults>
</compile_context>

<pallas_src>
import jax
import jax.numpy as jnp
from jax.experimental import pallas as pl
from jax.experimental.pallas import tpu as pltpu

LANE = 128              # K and Cout are zero-padded to multiples of the lane width
SUBLANE_PACK = 16       # bf16 sublane packing; row tiles kept multiples of this
TM_MAX = 2048           # largest row tile considered
TM_MIN = 256            # smallest row tile considered
VMEM_BUDGET = 36 * 1024 * 1024   # per-step working-set target (incl. double buffers)


def _round_up(x, m):
    return (x + m - 1) // m * m


# ----------------------------------------------------------------------------
# Kernel: one fused GEMM (all 9 conv taps folded into K) + folded-BN epilogue.
# ----------------------------------------------------------------------------
def _conv_bn_gemm_kernel(x_ref, w_ref, b_ref, o_ref):
    """
    x_ref : (tm, Kp)         bf16 im2col tile, auto-pipelined per grid step
    w_ref : (Kp, Cout_pad)   bf16 folded weights, VMEM resident (constant index)
    b_ref : (1, Cout_pad)    f32 folded conv-bias + BN affine
    o_ref : (tm, Cout_pad)   output tile (f32 or bf16)
    """
    acc = jnp.dot(x_ref[...], w_ref[...], preferred_element_type=jnp.float32)
    o_ref[...] = (acc + b_ref[...]).astype(o_ref.dtype)


# ----------------------------------------------------------------------------
# Host-side folding: conv weights * BN scale into the 16*Cin tap-stack layout.
# ----------------------------------------------------------------------------
def _fold_conv_bn_weights(params, kp, cout_pad, compute_dtype, eps=1e-5):
    w = params["conv_w"]                              # (Cout, Cin, 3, 3)
    cout, cin = w.shape[0], w.shape[1]
    scale = params["bn_gamma"] * jax.lax.rsqrt(params["bn_var"] + eps)   # (Cout,)
    bias = (params["conv_b"] - params["bn_mean"]) * scale + params["bn_beta"]
    w_s = w * scale[:, None, None, None]              # fold BN scale into weights

    # K layout: K index = ((di*2+dj)*4 + (ph*2+pw))*Cin + c, with conv tap
    # kh = 2*di + ph, kw = 2*dj + pw.  kh or kw == 3 -> zero block (7 of 16).
    wmat = jnp.zeros((kp, cout_pad), jnp.float32)
    for di in (0, 1):
        for dj in (0, 1):
            for ph in (0, 1):
                for pw in (0, 1):
                    kh, kw = 2 * di + ph, 2 * dj + pw
                    if kh < 3 and kw < 3:
                        c0 = ((di * 2 + dj) * 4 + (ph * 2 + pw)) * cin
                        wmat = wmat.at[c0:c0 + cin, :cout].set(w_s[:, :, kh, kw].T)

    bias = jnp.pad(bias, (0, cout_pad - cout)).reshape(1, cout_pad)
    return wmat.astype(compute_dtype), bias.astype(jnp.float32)


# ----------------------------------------------------------------------------
# Space-to-depth im2col: (B,H,W,Cin) -> (B*Ho*Wo, 16*Cin), exactly one row per
# output pixel (no spatial crop needed after the kernel).
# ----------------------------------------------------------------------------
def _space_to_depth_im2col(x_nhwc, ho, wo, compute_dtype):
    B, H, W, cin = x_nhwc.shape
    hs, ws = ho + 1, wo + 1
    xp = jnp.pad(x_nhwc, ((0, 0), (1, 2 * hs - 1 - H), (1, 2 * ws - 1 - W), (0, 0)))
    xs = xp.reshape(B, hs, 2, ws, 2, cin).transpose(0, 1, 3, 2, 4, 5)
    xs = xs.reshape(B, hs, ws, 4 * cin)
    # Output pixel (i, j) needs the 2x2 neighbourhood of space-to-depth cells.
    xcol = jnp.concatenate(
        [xs[:, :ho, :wo], xs[:, :ho, 1:], xs[:, 1:, :wo], xs[:, 1:, 1:]], axis=-1)
    return xcol.reshape(B * ho * wo, 16 * cin).astype(compute_dtype)


def _pick_tm(kp, cout_pad, out_bytes):
    """Largest power-of-two row tile whose double-buffered working set fits."""
    tm = TM_MAX
    while tm > TM_MIN:
        need = (2 * tm * kp * 2                 # double-buffered bf16 LHS tile
                + 2 * tm * cout_pad * out_bytes  # double-buffered output tile
                + 2 * kp * cout_pad * 2)         # resident weights (worst case x2)
        if need <= VMEM_BUDGET:
            break
        tm //= 2
    return tm


# ----------------------------------------------------------------------------
# ConvNorm forward (k=3 / s=2 / p=1 conv + folded BatchNorm), NHWC-native core.
# ----------------------------------------------------------------------------
def conv_norm_forward_nhwc(x_nhwc, params, *, tm=None,
                           compute_dtype=jnp.bfloat16, out_dtype=jnp.float32):
    B, H, W, cin = x_nhwc.shape
    cout = params["conv_w"].shape[0]
    ho = (H - 1) // 2 + 1
    wo = (W - 1) // 2 + 1
    m = B * ho * wo
    k = 16 * cin
    kp = _round_up(k, LANE)
    cout_pad = _round_up(cout, LANE)
    out_bytes = jnp.dtype(out_dtype).itemsize

    xcol = _space_to_depth_im2col(x_nhwc, ho, wo, compute_dtype)

    if tm is None:
        tm = _pick_tm(kp, cout_pad, out_bytes)
    tm = min(tm, _round_up(m, SUBLANE_PACK))     # cap only for tiny inputs
    m_pad = _round_up(m, tm)
    xcol = jnp.pad(xcol, ((0, m_pad - m), (0, kp - k)))

    wmat, bias = _fold_conv_bn_weights(params, kp, cout_pad, compute_dtype)

    out2d = pl.pallas_call(
        _conv_bn_gemm_kernel,
        out_shape=jax.ShapeDtypeStruct((m_pad, cout_pad), out_dtype),
        grid_spec=pltpu.PrefetchScalarGridSpec(
            num_scalar_prefetch=0,
            grid=(m_pad // tm,),
            in_specs=[
                pl.BlockSpec((tm, kp), lambda t: (t, 0)),           # im2col tile
                pl.BlockSpec((kp, cout_pad), lambda t: (0, 0)),     # resident weights
                pl.BlockSpec((1, cout_pad), lambda t: (0, 0)),      # folded bias
            ],
            out_specs=pl.BlockSpec((tm, cout_pad), lambda t: (t, 0)),
        ),
        compiler_params=pltpu.CompilerParams(
            # no cross-step state -> parallel grid (v7x megacore sharding)
            dimension_semantics=("parallel",),
            vmem_limit_bytes=48 * 1024 * 1024,   # headroom under v7x's 64 MiB
        ),
    )(xcol, wmat, bias)

    # Only the M / Cout zero-padding is sliced; no spatial crop remains.
    return out2d[:m, :cout].reshape(B, ho, wo, cout)      # NHWC


def conv_norm_forward(x_nchw, params, **kw):
    """PyTorch-interface wrapper (NCHW in / NCHW out).  In a real NHWC pipeline
    both transposes disappear -- use conv_norm_forward_nhwc directly."""
    x_nhwc = jnp.transpose(x_nchw, (0, 2, 3, 1))
    out = conv_norm_forward_nhwc(x_nhwc, params, **kw)
    return jnp.transpose(out, (0, 3, 1, 2))


# ----------------------------------------------------------------------------
# Parameter init (deterministic, synthetic) + pure-JAX reference.
# ----------------------------------------------------------------------------
def init_params(key, in_chs, out_chs):
    k1, k2, k3, k4, k5, k6 = jax.random.split(key, 6)
    return {
        "conv_w": 0.1 * jax.random.normal(k1, (out_chs, in_chs, 3, 3), jnp.float32),
        "conv_b": 0.1 * jax.random.normal(k2, (out_chs,), jnp.float32),
        "bn_gamma": 1.0 + 0.05 * jax.random.normal(k3, (out_chs,), jnp.float32),
        "bn_beta": 0.05 * jax.random.normal(k4, (out_chs,), jnp.float32),
        "bn_mean": 0.05 * jax.random.normal(k5, (out_chs,), jnp.float32),
        "bn_var": 0.5 + jnp.abs(jax.random.normal(k6, (out_chs,), jnp.float32)),
    }


def reference_forward(x, params):
    eps = 1e-5
    y = jax.lax.conv_general_dilated(
        x, params["conv_w"], window_strides=(2, 2), padding=((1, 1), (1, 1)),
        dimension_numbers=("NCHW", "OIHW", "NCHW"))
    y = y + params["conv_b"][None, :, None, None]
    scale = params["bn_gamma"] / jnp.sqrt(params["bn_var"] + eps)
    y = (y - params["bn_mean"][None, :, None, None]) * scale[None, :, None, None] \
        + params["bn_beta"][None, :, None, None]
    return y


if __name__ == "__main__":
    key = jax.random.PRNGKey(0)
    kx1, kp1, kx2, kp2 = jax.random.split(key, 4)

    # --- primary check: small NCHW input matching the PyTorch interface -------
    B, Cin, H, W = 2, 4, 16, 16
    Cout = 8
    x = jax.random.normal(kx1, (B, Cin, H, W), jnp.float32)
    params = init_params(kp1, Cin, Cout)

    fwd = jax.jit(conv_norm_forward)
    out = jax.block_until_ready(fwd(x, params))
    ref = jax.block_until_ready(reference_forward(x, params))
    assert out.shape == ref.shape == (B, Cout, 8, 8)
    # bf16 GEMM operands (f32 accumulation) -> loosened tolerance vs f32 reference.
    assert jnp.allclose(out, ref, atol=5e-2, rtol=5e-2), \
        float(jnp.max(jnp.abs(out - ref)))

    # --- secondary check: odd spatial size, wider channels, bf16 output path --
    B2, Cin2, H2, W2, Cout2 = 1, 16, 15, 15, 24
    x2 = jax.random.normal(kx2, (B2, Cin2, H2, W2), jnp.float32)
    params2 = init_params(kp2, Cin2, Cout2)
    fwd_bf16 = jax.jit(lambda a, p: conv_norm_forward(a, p, out_dtype=jnp.bfloat16))
    out2 = jax.block_until_ready(fwd_bf16(x2, params2))
    ref2 = jax.block_until_ready(reference_forward(x2, params2))
    assert out2.shape == ref2.shape == (B2, Cout2, 8, 8)
    assert jnp.allclose(out2.astype(jnp.float32), ref2, atol=1e-1, rtol=1e-1), \
        float(jnp.max(jnp.abs(out2.astype(jnp.float32) - ref2)))

    print("KERNEL_OK")
</pallas_src>

<mosaic_0001>
module attributes {stable_mosaic.version = 11 : i64} {
  func.func @_conv_bn_gemm_kernel(%arg0: i32, %arg1: memref<128x128xbf16, #tpu.memory_space<vmem>>, %arg2: memref<128x128xbf16, #tpu.memory_space<vmem>>, %arg3: memref<1x128xf32, #tpu.memory_space<vmem>>, %arg4: memref<128x128xf32, #tpu.memory_space<vmem>>) attributes {dimension_semantics = [#tpu.dimension_semantics<parallel>], iteration_bounds = array<i64: 1>, scalar_prefetch = 0 : i64, scratch_operands = 0 : i64, tpu.core_type = #tpu.core_type<tc>, window_params = [{transform_indices = @transform_0, window_bounds = array<i64: 128, 128>}, {pipeline_mode = #tpu.pipeline_mode<synchronous>, transform_indices = @transform_1, window_bounds = array<i64: 128, 128>}, {pipeline_mode = #tpu.pipeline_mode<synchronous>, transform_indices = @transform_2, window_bounds = array<i64: 1, 128>}, {transform_indices = @transform_3, window_bounds = array<i64: 128, 128>}]} {
    %c0 = arith.constant 0 : index
    %c0_0 = arith.constant 0 : index
    %0 = vector.load %arg1[%c0, %c0_0] : memref<128x128xbf16, #tpu.memory_space<vmem>>, vector<128x128xbf16>
    %c0_1 = arith.constant 0 : index
    %c0_2 = arith.constant 0 : index
    %1 = vector.load %arg2[%c0_1, %c0_2] : memref<128x128xbf16, #tpu.memory_space<vmem>>, vector<128x128xbf16>
    %cst = arith.constant dense<0.000000e+00> : vector<128x128xf32>
    %2 = tpu.matmul %0, %1, %cst {dimension_numbers = #tpu.dot_dimension_numbers<[1], [0], [0], [1], [0, 0, 1, 1], [], []>} : vector<128x128xbf16>, vector<128x128xbf16>, vector<128x128xf32> -> vector<128x128xf32>
    %c0_3 = arith.constant 0 : index
    %c0_4 = arith.constant 0 : index
    %3 = vector.load %arg3[%c0_3, %c0_4] : memref<1x128xf32, #tpu.memory_space<vmem>>, vector<1x128xf32>
    %4 = vector.broadcast %3 : vector<1x128xf32> to vector<128x128xf32>
    %5 = arith.addf %2, %4 : vector<128x128xf32>
    %c0_5 = arith.constant 0 : index
    %c0_6 = arith.constant 0 : index
    %6 = vector.load %arg4[%c0_5, %c0_6] : memref<128x128xf32, #tpu.memory_space<vmem>>, vector<128x128xf32>
    tpu.vector_store %arg4[%c0_5, %c0_6], %5 {strides = array<i32>} : memref<128x128xf32, #tpu.memory_space<vmem>>, vector<128x128xf32>,
    return
  }
  func.func @transform_0(%arg0: i32) -> (i32, i32) {
    %c0_i32 = arith.constant 0 : i32
    %c0_i32_0 = arith.constant 0 : i32
    return %arg0, %c0_i32 : i32, i32
  }
  func.func @transform_1(%arg0: i32) -> (i32, i32) {
    %c0_i32 = arith.constant 0 : i32
    %c0_i32_0 = arith.constant 0 : i32
    %c0_i32_1 = arith.constant 0 : i32
    return %c0_i32, %c0_i32_0 : i32, i32
  }
  func.func @transform_2(%arg0: i32) -> (i32, i32) {
    %c0_i32 = arith.constant 0 : i32
    %c0_i32_0 = arith.constant 0 : i32
    %c0_i32_1 = arith.constant 0 : i32
    return %c0_i32, %c0_i32_0 : i32, i32
  }
  func.func @transform_3(%arg0: i32) -> (i32, i32) {
    %c0_i32 = arith.constant 0 : i32
    %c0_i32_0 = arith.constant 0 : i32
    return %arg0, %c0_i32 : i32, i32
  }
}

</mosaic_0001>

<llo_original>
// kernel: conv_norm_forward.1
$region0: #{conv_norm_forward.1}
  #allocation0 [shape = 'u32[]', space=smem, size = 0x4, offset = 0x4, fixed_abs, tag = 'smem constant byte address 0x4 - core index']
  #allocation1 [shape = 'u32[144,128]{1,0:T(1,128)}', space=vmem, size = 0x12000, scoped, tag = 'internal scratch']
  %s0 = inlined_call_operand.vmem [shape: bf16[128,128], index: 0, kind: input, shape index: {}]
  %s1 = inlined_call_operand.vmem [shape: bf16[128,128], index: 1, kind: input, shape index: {}]
  %s2 = inlined_call_operand.vmem [shape: f32[1,128], index: 2, kind: input, shape index: {}]
  %s3 = inlined_call_operand.vmem [shape: f32[128,128], index: 3, kind: output, shape index: {}]
  %s4 = sld [smem:[#allocation0]]
  $region22: #{conv_norm_forward.1} parent=0
    _
  %s6 = ssub.s32 1, %s4
  %s7 = scalar_select 0, %s6, %s4
  // Predicated region
  $region2: #{conv_norm_forward.1} parent=0 // pred_check
    _
  $region3: #{conv_norm_forward.1} parent=0 // pred_check_branch
    %9 = sbr.rel (0) target = $region5
  $region4: #{conv_norm_forward.1} parent=0 // pred_region
    _
  $region5: #{conv_norm_forward.1} parent=0 // pred_fallthru
    _
  // Predicated region
  $region6: #{conv_norm_forward.1} parent=0 // pred_check
    _
  $region7: #{conv_norm_forward.1} parent=0 // pred_check_branch
    %11 = sbr.rel (0) target = $region9
  $region8: #{conv_norm_forward.1} parent=0 // pred_region
    _
  $region9: #{conv_norm_forward.1} parent=0 // pred_fallthru
    _
  // Predicated region
  $region10: #{conv_norm_forward.1} parent=0 // pred_check
    _
  $region11: #{conv_norm_forward.1} parent=0 // pred_check_branch
    %13 = sbr.rel (0) target = $region13
  $region12: #{conv_norm_forward.1} parent=0 // pred_region
    _
  $region13: #{conv_norm_forward.1} parent=0 // pred_fallthru
    _
  %v15 = vld [vmem:[%s0] sm:$0xf]
  %v16 = vld [vmem:[%s0 + $0x4] sm:$0xf]
  %v17 = vld [vmem:[%s0 + $0x8] sm:$0xf]
  %v18 = vld [vmem:[%s0 + $0xc] sm:$0xf]
  %v19 = vld [vmem:[%s0 + $0x10] sm:$0xf]
  %v20 = vld [vmem:[%s0 + $0x14] sm:$0xf]
  %v21 = vld [vmem:[%s0 + $0x18] sm:$0xf]
  %v22 = vld [vmem:[%s0 + $0x1c] sm:$0xf]
  %v23 = vld [vmem:[%s0 + $0x20] sm:$0xf]
  %v24 = vld [vmem:[%s0 + $0x24] sm:$0xf]
  %v25 = vld [vmem:[%s0 + $0x28] sm:$0xf]
  %v26 = vld [vmem:[%s0 + $0x2c] sm:$0xf]
  %v27 = vld [vmem:[%s0 + $0x30] sm:$0xf]
  %v28 = vld [vmem:[%s0 + $0x34] sm:$0xf]
  %v29 = vld [vmem:[%s0 + $0x38] sm:$0xf]
  %v30 = vld [vmem:[%s0 + $0x3c] sm:$0xf]
  %v31 = vld [vmem:[%s1] sm:$0xf]
  %v32 = vld [vmem:[%s1 + $0x4] sm:$0xf]
  %v33 = vld [vmem:[%s1 + $0x8] sm:$0xf]
  %v34 = vld [vmem:[%s1 + $0xc] sm:$0xf]
  %v35 = vld [vmem:[%s1 + $0x10] sm:$0xf]
  %v36 = vld [vmem:[%s1 + $0x14] sm:$0xf]
  %v37 = vld [vmem:[%s1 + $0x18] sm:$0xf]
  %v38 = vld [vmem:[%s1 + $0x1c] sm:$0xf]
  %v39 = vld [vmem:[%s1 + $0x20] sm:$0xf]
  %v40 = vld [vmem:[%s1 + $0x24] sm:$0xf]
  %v41 = vld [vmem:[%s1 + $0x28] sm:$0xf]
  %v42 = vld [vmem:[%s1 + $0x2c] sm:$0xf]
  %v43 = vld [vmem:[%s1 + $0x30] sm:$0xf]
  %v44 = vld [vmem:[%s1 + $0x34] sm:$0xf]
  %v45 = vld [vmem:[%s1 + $0x38] sm:$0xf]
  %v46 = vld [vmem:[%s1 + $0x3c] sm:$0xf]
  %v47 = vld [vmem:[%s2] sm:$0x1]
  %v49 = vlaneseq
  %v50 = vshrl.u32 %v49, 7
  %v51 = vsub.s32 0, %v50
  %v52 = vrot.slane %v47, %v51
  %v70 = vunpack.c.l.b16 %v15
  %v71 = vunpack.c.l.b16 %v16
  %v72 = vunpack.c.l.b16 %v17
  %v73 = vunpack.c.l.b16 %v18
  %v74 = vunpack.c.l.b16 %v19
  %v75 = vunpack.c.l.b16 %v20
  %v76 = vunpack.c.l.b16 %v21
  %v77 = vunpack.c.l.b16 %v22
  %v78 = vunpack.c.l.b16 %v23
  %v79 = vunpack.c.l.b16 %v24
  %v80 = vunpack.c.l.b16 %v25
  %v81 = vunpack.c.l.b16 %v26
  %v82 = vunpack.c.l.b16 %v27
  %v83 = vunpack.c.l.b16 %v28
  %v84 = vunpack.c.l.b16 %v29
  %v85 = vunpack.c.l.b16 %v30
  %v86 = vpack.c.b16 %v71, %v70
  %v87 = vpack.c.b16 %v73, %v72
  %v88 = vpack.c.b16 %v75, %v74
  %v89 = vpack.c.b16 %v77, %v76
  %v90 = vpack.c.b16 %v79, %v78
  %v91 = vpack.c.b16 %v81, %v80
  %v92 = vpack.c.b16 %v83, %v82
  %v93 = vpack.c.b16 %v85, %v84
  %v118 = vunpack.c.l.b16 %v31
  %v119 = vunpack.c.l.b16 %v32
  %v120 = vunpack.c.l.b16 %v33
  %v121 = vunpack.c.l.b16 %v34
  %v122 = vunpack.c.l.b16 %v35
  %v123 = vunpack.c.l.b16 %v36
  %v124 = vunpack.c.l.b16 %v37
  %v125 = vunpack.c.l.b16 %v38
  %v126 = vunpack.c.l.b16 %v39
  %v127 = vunpack.c.l.b16 %v40
  %v128 = vunpack.c.l.b16 %v41
  %v129 = vunpack.c.l.b16 %v42
  %v130 = vunpack.c.l.b16 %v43
  %v131 = vunpack.c.l.b16 %v44
  %v132 = vunpack.c.l.b16 %v45
  %v133 = vunpack.c.l.b16 %v46
  %v134 = vpack.c.b16 %v119, %v118
  %v135 = vpack.c.b16 %v121, %v120
  %v136 = vpack.c.b16 %v123, %v122
  %v137 = vpack.c.b16 %v125, %v124
  %v138 = vpack.c.b16 %v127, %v126
  %v139 = vpack.c.b16 %v129, %v128
  %v140 = vpack.c.b16 %v131, %v130
  %v141 = vpack.c.b16 %v133, %v132
  %150 = vmatprep.subr.bf16.mxu0 0
  %151 = vmatpush1.bf16.msra.mxu0 %v134
  %152 = vmatprep.subr.bf16.mxu0 0
  %153 = vmatpush1.bf16.msra.mxu0 %v135
  %154 = vmatprep.subr.bf16.mxu0 0
  %155 = vmatpush1.bf16.msra.mxu0 %v136
  %156 = vmatprep.subr.bf16.mxu0 0
  %157 = vmatpush1.bf16.msra.mxu0 %v137
  %158 = vmatprep.subr.bf16.mxu0 0
  %159 = vmatpush1.bf16.msra.mxu0 %v138
  %160 = vmatprep.subr.bf16.mxu0 0
  %161 = vmatpush1.bf16.msra.mxu0 %v139
  %162 = vmatprep.subr.bf16.mxu0 0
  %163 = vmatpush1.bf16.msra.mxu0 %v140
  %164 = vmatprep.subr.bf16.mxu0 0
  %165 = vmatpush1.bf16.msra.mxu0 %v141
  %166 = vmatprep.subr.bf16.mxu0 0
  %167 = vmatpush1.bf16.msra.mxu0 0
  %168 = vmatprep.subr.bf16.mxu0 0
  %169 = vmatpush1.bf16.msra.mxu0 0
  %170 = vmatprep.subr.bf16.mxu0 0
  %171 = vmatpush1.bf16.msra.mxu0 0
  %172 = vmatprep.subr.bf16.mxu0 0
  %173 = vmatpush1.bf16.msra.mxu0 0
  %174 = vmatprep.subr.bf16.mxu0 0
  %175 = vmatpush1.bf16.msra.mxu0 0
  %176 = vmatprep.subr.bf16.mxu0 0
  %177 = vmatpush1.bf16.msra.mxu0 0
  %178 = vmatprep.subr.bf16.mxu0 0
  %179 = vmatpush1.bf16.msra.mxu0 0
  %180 = vmatprep.subr.bf16.mxu0 0
  %181 = vmatpush1.bf16.msra.mxu0 0
  %182 = vmatprep.mubr.bf16.mxu0 0
  %183 = vmatmul.mubr.bf16.gmra.mrb[0].mxu0 %v86
  %v184 = vpop.f32.mrb[0].mxu0
  %v185 = vadd.f32 %v52, %v184
  %v186 = vpop.f32.mrb[0].mxu0
  %v187 = vpop.f32.mrb[0].mxu0
  %v188 = vadd.f32 %v52, %v187
  %v189 = vpop.f32.mrb[0].mxu0
  %190 = vmatprep.mubr.bf16.mxu0 0
  %191 = vmatmul.mubr.bf16.gmra.mrb[0].mxu0 %v87
  %v192 = vpop.f32.mrb[0].mxu0
  %v193 = vadd.f32 %v52, %v192
  %v194 = vpop.f32.mrb[0].mxu0
  %v195 = vpop.f32.mrb[0].mxu0
  %v196 = vadd.f32 %v52, %v195
  %v197 = vpop.f32.mrb[0].mxu0
  %198 = vmatprep.mubr.bf16.mxu0 0
  %199 = vmatmul.mubr.bf16.gmra.mrb[0].mxu0 %v88
  %v200 = vpop.f32.mrb[0].mxu0
  %v201 = vadd.f32 %v52, %v200
  %v202 = vpop.f32.mrb[0].mxu0
  %v203 = vpop.f32.mrb[0].mxu0
  %v204 = vadd.f32 %v52, %v203
  %v205 = vpop.f32.mrb[0].mxu0
  %206 = vmatprep.mubr.bf16.mxu0 0
  %207 = vmatmul.mubr.bf16.gmra.mrb[0].mxu0 %v89
  %v208 = vpop.f32.mrb[0].mxu0
  %v209 = vadd.f32 %v52, %v208
  %v210 = vpop.f32.mrb[0].mxu0
  %v211 = vpop.f32.mrb[0].mxu0
  %v212 = vadd.f32 %v52, %v211
  %v213 = vpop.f32.mrb[0].mxu0
  %214 = vmatprep.mubr.bf16.mxu0 0
  %215 = vmatmul.mubr.bf16.gmra.mrb[0].mxu0 %v90
  %v216 = vpop.f32.mrb[0].mxu0
  %v217 = vadd.f32 %v52, %v216
  %v218 = vpop.f32.mrb[0].mxu0
  %v219 = vpop.f32.mrb[0].mxu0
  %v220 = vadd.f32 %v52, %v219
  %v221 = vpop.f32.mrb[0].mxu0
  %222 = vmatprep.mubr.bf16.mxu0 0
  %223 = vmatmul.mubr.bf16.gmra.mrb[0].mxu0 %v91
  %v224 = vpop.f32.mrb[0].mxu0
  %v225 = vadd.f32 %v52, %v224
  %v226 = vpop.f32.mrb[0].mxu0
  %v227 = vpop.f32.mrb[0].mxu0
  %v228 = vadd.f32 %v52, %v227
  %v229 = vpop.f32.mrb[0].mxu0
  %230 = vmatprep.mubr.bf16.mxu0 0
  %231 = vmatmul.mubr.bf16.gmra.mrb[0].mxu0 %v92
  %v232 = vpop.f32.mrb[0].mxu0
  %v233 = vadd.f32 %v52, %v232
  %v234 = vpop.f32.mrb[0].mxu0
  %v235 = vpop.f32.mrb[0].mxu0
  %v236 = vadd.f32 %v52, %v235
  %v237 = vpop.f32.mrb[0].mxu0
  %238 = vmatprep.mubr.bf16.mxu0 0
  %239 = vmatmul.mubr.bf16.gmra.mrb[0].mxu0 %v93
  %v240 = vpop.f32.mrb[0].mxu0
  %v241 = vadd.f32 %v52, %v240
  %v242 = vpop.f32.mrb[0].mxu0
  %v243 = vpop.f32.mrb[0].mxu0
  %v244 = vadd.f32 %v52, %v243
  %v245 = vpop.f32.mrb[0].mxu0
  %246 = vdwg.mxu0
  %247 = vst [vmem:[%s3] sm:$0xff] %v185
  %248 = vst [vmem:[%s3 + $0x8] sm:$0xff] %v188
  %249 = vst [vmem:[%s3 + $0x10] sm:$0xff] %v193
  %250 = vst [vmem:[%s3 + $0x18] sm:$0xff] %v196
  %251 = vst [vmem:[%s3 + $0x20] sm:$0xff] %v201
  %252 = vst [vmem:[%s3 + $0x28] sm:$0xff] %v204
  %253 = vst [vmem:[%s3 + $0x30] sm:$0xff] %v209
  %254 = vst [vmem:[%s3 + $0x38] sm:$0xff] %v212
  %255 = vst [vmem:[%s3 + $0x40] sm:$0xff] %v217
  %256 = vst [vmem:[%s3 + $0x48] sm:$0xff] %v220
  %257 = vst [vmem:[%s3 + $0x50] sm:$0xff] %v225
  %258 = vst [vmem:[%s3 + $0x58] sm:$0xff] %v228
  %259 = vst [vmem:[%s3 + $0x60] sm:$0xff] %v233
  %260 = vst [vmem:[%s3 + $0x68] sm:$0xff] %v236
  %261 = vst [vmem:[%s3 + $0x70] sm:$0xff] %v241
  %262 = vst [vmem:[%s3 + $0x78] sm:$0xff] %v244
  // Predicated region
  $region14: #{conv_norm_forward.1} parent=0 // pred_check
    _
  $region15: #{conv_norm_forward.1} parent=0 // pred_check_branch
    %264 = sbr.rel (0) target = $region17
  $region16: #{conv_norm_forward.1} parent=0 // pred_region
    _
  $region17: #{conv_norm_forward.1} parent=0 // pred_fallthru
    _
  // Predicated region
  $region18: #{conv_norm_forward.1} parent=0 // pred_check
    _
  $region19: #{conv_norm_forward.1} parent=0 // pred_check_branch
    %266 = sbr.rel (0) target = $region21
  $region20: #{conv_norm_forward.1} parent=0 // pred_region
    _
  $region21: #{conv_norm_forward.1} parent=0 // pred_fallthru
    _

</llo_original>
